<compile_context>
chip_gen: v7x
topology: tpu7x:2x2x1
jax: 0.10.0
libtpu: 0.0.40
codegen_flags: <defaults>
</compile_context>

<pallas_src>
import jax
import jax.numpy as jnp
from jax.experimental import pallas as pl
from jax.experimental.pallas import tpu as pltpu


def _make_triplet_kernel(margin, batch_size, tb):
    margin = float(margin)          # python scalar -> trace literal (no capture)
    batch_size = int(batch_size)
    tb = int(tb)

    def kernel(a_ref, p_ref, n_ref, m_ref, o_ref):
        i = pl.program_id(0)

        # Stream in storage dtype, upcast on the VPU (v5e has no bf16 VALU).
        a = a_ref[...].astype(jnp.float32)
        p = p_ref[...].astype(jnp.float32)
        n = n_ref[...].astype(jnp.float32)
        m = m_ref[...].astype(jnp.float32)          # (TB, 1)

        dp = a - p
        dn = a - n
        pos_dist = jnp.sqrt(jnp.sum(dp * dp, axis=-1, keepdims=True))   # (TB, 1)
        neg_dist = jnp.sqrt(jnp.sum(dn * dn, axis=-1, keepdims=True))   # (TB, 1)

        raw = jnp.maximum(pos_dist + (margin - neg_dist) * m, 0.0)      # (TB, 1)

        # Mask ragged tail rows of the last block with a select (NOT a multiply:
        # OOB block rows hold undefined data that could be NaN/Inf).
        row = i * tb + jax.lax.broadcasted_iota(jnp.int32, (tb, 1), 0)
        loss = jnp.where(row < batch_size, raw, 0.0)

        block_sum = jnp.sum(loss)

        # Write this block's partial sum into its own (8,128) output tile
        # (at [0,0], zeros elsewhere). Independent per grid step -> safe to
        # shard the batch axis across TensorCores ("parallel").
        r = jax.lax.broadcasted_iota(jnp.int32, (8, 128), 0)
        c = jax.lax.broadcasted_iota(jnp.int32, (8, 128), 1)
        o_ref[...] = jnp.where((r == 0) & (c == 0), block_sum, 0.0)

    return kernel


def _round_up(x, m):
    return (x + m - 1) // m * m


def triplet_loss(anchor, positive, negative, mask=None, margin=1.0):
    """anchor/positive/negative: (B, D); mask: (B,) or (B, 1). Returns scalar f32."""
    B, D = anchor.shape
    if mask is None:
        mask = jnp.ones((B,), dtype=jnp.float32)
    mask2d = jnp.reshape(mask, (B, 1)).astype(jnp.float32)

    # ---- Tile sizing: target ~4 MiB per input block (HBM-bound kernel) ------
    itemsize = jnp.dtype(anchor.dtype).itemsize
    align = max(8, 32 // itemsize)                 # f32 -> 8, bf16 -> 16, i8 -> 32

    try:
        vmem_cap = int(pltpu.get_tpu_info().vmem_capacity_bytes)
    except Exception:
        vmem_cap = 64 * 1024 * 1024                # conservative (v7x per-TC)
    vmem_budget = int(vmem_cap * 0.6)

    target_block_bytes = 4 * 1024 * 1024
    tb_by_bytes = max(align, (target_block_bytes // (D * itemsize)) // align * align)

    # 3 streamed inputs + (TB,1) mask, each double-buffered by the pipeline.
    per_row_pipeline = 2 * (3 * D * itemsize + 4)
    tb_by_vmem = max(align, ((vmem_budget - (1 << 20)) // per_row_pipeline) // align * align)

    TB = min(tb_by_bytes, tb_by_vmem, _round_up(B, align))
    TB = max(align, (TB // align) * align)

    num_blocks = (B + TB - 1) // TB

    needed_vmem = (2 * (3 * TB * D * itemsize + TB * 4)      # double-buffered inputs
                   + 2 * 8 * 128 * 4                          # output tiles
                   + (2 << 20))                               # margin
    vmem_limit = int(min(max(needed_vmem, 24 * 1024 * 1024), 0.75 * vmem_cap))

    spec_bd = pl.BlockSpec((TB, D), lambda i: (i, 0))
    spec_b1 = pl.BlockSpec((TB, 1), lambda i: (i, 0))

    partial = pl.pallas_call(
        _make_triplet_kernel(margin, B, TB),
        out_shape=jax.ShapeDtypeStruct((num_blocks * 8, 128), jnp.float32),
        grid=(num_blocks,),
        in_specs=[spec_bd, spec_bd, spec_bd, spec_b1],
        out_specs=pl.BlockSpec((8, 128), lambda i: (i, 0)),
        compiler_params=pltpu.CompilerParams(
            dimension_semantics=("parallel",),
            vmem_limit_bytes=vmem_limit,
        ),
    )(anchor, positive, negative, mask2d)

    # Tiny reduction over per-block partials; mean = sum / true batch size.
    return jnp.sum(partial) * (1.0 / float(B))


def _reference(anchor, positive, negative, mask, margin=1.0):
    anchor = anchor.astype(jnp.float32)
    positive = positive.astype(jnp.float32)
    negative = negative.astype(jnp.float32)
    pos = jnp.sqrt(jnp.sum((anchor - positive) ** 2, axis=-1))
    neg = jnp.sqrt(jnp.sum((anchor - negative) ** 2, axis=-1))
    loss = jnp.maximum(pos + (margin - neg) * mask.reshape(-1), 0.0)
    return loss.mean()


if __name__ == "__main__":
    key = jax.random.PRNGKey(0)
    k1, k2, k3, k4 = jax.random.split(key, 4)

    # Small test shapes consistent with the module.
    B, D = 8, 32
    anchor = jax.random.normal(k1, (B, D), dtype=jnp.float32)
    positive = jax.random.normal(k2, (B, D), dtype=jnp.float32)
    negative = jax.random.normal(k3, (B, D), dtype=jnp.float32)
    mask = (jax.random.uniform(k4, (B,)) > 0.3).astype(jnp.float32)

    out = triplet_loss(anchor, positive, negative, mask, margin=1.0)
    out = jax.block_until_ready(out)

    ref = _reference(anchor, positive, negative, mask, margin=1.0)
    assert jnp.allclose(out, ref, atol=1e-5, rtol=1e-5), (out, ref)

    # Also exercise the ragged-tail (B % TB != 0, no wrapper pad) path.
    B2, D2 = 100, 256
    kk = jax.random.split(jax.random.PRNGKey(1), 4)
    a2 = jax.random.normal(kk[0], (B2, D2), dtype=jnp.float32)
    p2 = jax.random.normal(kk[1], (B2, D2), dtype=jnp.float32)
    n2 = jax.random.normal(kk[2], (B2, D2), dtype=jnp.float32)
    m2 = (jax.random.uniform(kk[3], (B2,)) > 0.5).astype(jnp.float32)
    out2 = jax.block_until_ready(triplet_loss(a2, p2, n2, m2, margin=0.5))
    ref2 = _reference(a2, p2, n2, m2, margin=0.5)
    assert jnp.allclose(out2, ref2, atol=1e-5, rtol=1e-5), (out2, ref2)

    print("KERNEL_OK")
</pallas_src>

<mosaic_0001>
module attributes {stable_mosaic.version = 11 : i64} {
  func.func @kernel(%arg0: i32, %arg1: memref<8x32xf32, #tpu.memory_space<vmem>>, %arg2: memref<8x32xf32, #tpu.memory_space<vmem>>, %arg3: memref<8x32xf32, #tpu.memory_space<vmem>>, %arg4: memref<8x1xf32, #tpu.memory_space<vmem>>, %arg5: memref<8x128xf32, #tpu.memory_space<vmem>>) attributes {dimension_semantics = [#tpu.dimension_semantics<parallel>], iteration_bounds = array<i64: 1>, scalar_prefetch = 0 : i64, scratch_operands = 0 : i64, tpu.core_type = #tpu.core_type<tc>, window_params = [{transform_indices = @transform_0, window_bounds = array<i64: 8, 32>}, {transform_indices = @transform_1, window_bounds = array<i64: 8, 32>}, {transform_indices = @transform_2, window_bounds = array<i64: 8, 32>}, {transform_indices = @transform_3, window_bounds = array<i64: 8, 1>}, {transform_indices = @transform_4, window_bounds = array<i64: 8, 128>}]} {
    %c0 = arith.constant 0 : index
    %c0_0 = arith.constant 0 : index
    %0 = vector.load %arg1[%c0, %c0_0] : memref<8x32xf32, #tpu.memory_space<vmem>>, vector<8x32xf32>
    %c0_1 = arith.constant 0 : index
    %c0_2 = arith.constant 0 : index
    %1 = vector.load %arg2[%c0_1, %c0_2] : memref<8x32xf32, #tpu.memory_space<vmem>>, vector<8x32xf32>
    %c0_3 = arith.constant 0 : index
    %c0_4 = arith.constant 0 : index
    %2 = vector.load %arg3[%c0_3, %c0_4] : memref<8x32xf32, #tpu.memory_space<vmem>>, vector<8x32xf32>
    %c0_5 = arith.constant 0 : index
    %c0_6 = arith.constant 0 : index
    %3 = vector.load %arg4[%c0_5, %c0_6] : memref<8x1xf32, #tpu.memory_space<vmem>>, vector<8x1xf32>
    %4 = arith.subf %0, %1 : vector<8x32xf32>
    %5 = arith.subf %0, %2 : vector<8x32xf32>
    %6 = arith.mulf %4, %4 : vector<8x32xf32>
    %cst = arith.constant dense<0.000000e+00> : vector<8xf32>
    %7 = vector.multi_reduction <add>, %6, %cst [1] : vector<8x32xf32> to vector<8xf32>
    %8 = vector.shape_cast %7 : vector<8xf32> to vector<8x1xf32>
    %9 = math.sqrt %8 : vector<8x1xf32>
    %10 = arith.mulf %5, %5 : vector<8x32xf32>
    %cst_7 = arith.constant dense<0.000000e+00> : vector<8xf32>
    %11 = vector.multi_reduction <add>, %10, %cst_7 [1] : vector<8x32xf32> to vector<8xf32>
    %12 = vector.shape_cast %11 : vector<8xf32> to vector<8x1xf32>
    %13 = math.sqrt %12 : vector<8x1xf32>
    %cst_8 = arith.constant 1.000000e+00 : f32
    %14 = vector.broadcast %cst_8 : f32 to vector<8x1xf32>
    %15 = arith.subf %14, %13 : vector<8x1xf32>
    %16 = arith.mulf %15, %3 : vector<8x1xf32>
    %17 = arith.addf %9, %16 : vector<8x1xf32>
    %cst_9 = arith.constant 0.000000e+00 : f32
    %18 = vector.broadcast %cst_9 : f32 to vector<8x1xf32>
    %19 = arith.maximumf %17, %18 : vector<8x1xf32>
    %c8_i32 = arith.constant 8 : i32
    %20 = arith.muli %arg0, %c8_i32 : i32
    %21 = tpu.iota {dimensions = array<i32: 0>} : vector<8x1xi32>
    %22 = vector.broadcast %20 : i32 to vector<8x1xi32>
    %23 = arith.addi %22, %21 : vector<8x1xi32>
    %c8_i32_10 = arith.constant 8 : i32
    %24 = vector.broadcast %c8_i32_10 : i32 to vector<8x1xi32>
    %25 = arith.cmpi slt, %23, %24 : vector<8x1xi32>
    %cst_11 = arith.constant 0.000000e+00 : f32
    %26 = vector.broadcast %cst_11 : f32 to vector<8x1xf32>
    %27 = arith.select %25, %19, %26 : vector<8x1xi1>, vector<8x1xf32>
    %28 = vector.shape_cast %27 : vector<8x1xf32> to vector<1x8x1xf32>
    %cst_12 = arith.constant dense<0.000000e+00> : vector<1xf32>
    %29 = vector.multi_reduction <add>, %28, %cst_12 [1, 2] : vector<1x8x1xf32> to vector<1xf32>
    %30 = vector.shape_cast %29 : vector<1xf32> to vector<1x1x1xf32>
    %31 = vector.extract %30[0, 0, 0] : f32 from vector<1x1x1xf32>
    %32 = tpu.iota {dimensions = array<i32: 0>} : vector<8x128xi32>
    %33 = tpu.iota {dimensions = array<i32: 1>} : vector<8x128xi32>
    %c0_i32 = arith.constant 0 : i32
    %34 = vector.broadcast %c0_i32 : i32 to vector<8x128xi32>
    %35 = arith.cmpi eq, %32, %34 : vector<8x128xi32>
    %c0_i32_13 = arith.constant 0 : i32
    %36 = vector.broadcast %c0_i32_13 : i32 to vector<8x128xi32>
    %37 = arith.cmpi eq, %33, %36 : vector<8x128xi32>
    %38 = arith.andi %35, %37 : vector<8x128xi1>
    %cst_14 = arith.constant 0.000000e+00 : f32
    %39 = vector.broadcast %31 : f32 to vector<8x128xf32>
    %40 = vector.broadcast %cst_14 : f32 to vector<8x128xf32>
    %41 = arith.select %38, %39, %40 : vector<8x128xi1>, vector<8x128xf32>
    %c0_15 = arith.constant 0 : index
    %c0_16 = arith.constant 0 : index
    %42 = vector.load %arg5[%c0_15, %c0_16] : memref<8x128xf32, #tpu.memory_space<vmem>>, vector<8x128xf32>
    tpu.vector_store %arg5[%c0_15, %c0_16], %41 {strides = array<i32>} : memref<8x128xf32, #tpu.memory_space<vmem>>, vector<8x128xf32>,
    return
  }
  func.func @transform_0(%arg0: i32) -> (i32, i32) {
    %c0_i32 = arith.constant 0 : i32
    %c0_i32_0 = arith.constant 0 : i32
    return %arg0, %c0_i32 : i32, i32
  }
  func.func @transform_1(%arg0: i32) -> (i32, i32) {
    %c0_i32 = arith.constant 0 : i32
    %c0_i32_0 = arith.constant 0 : i32
    return %arg0, %c0_i32 : i32, i32
  }
  func.func @transform_2(%arg0: i32) -> (i32, i32) {
    %c0_i32 = arith.constant 0 : i32
    %c0_i32_0 = arith.constant 0 : i32
    return %arg0, %c0_i32 : i32, i32
  }
  func.func @transform_3(%arg0: i32) -> (i32, i32) {
    %c0_i32 = arith.constant 0 : i32
    %c0_i32_0 = arith.constant 0 : i32
    return %arg0, %c0_i32 : i32, i32
  }
  func.func @transform_4(%arg0: i32) -> (i32, i32) {
    %c0_i32 = arith.constant 0 : i32
    %c0_i32_0 = arith.constant 0 : i32
    return %arg0, %c0_i32 : i32, i32
  }
}

</mosaic_0001>

<llo_original>
// kernel: tpu_custom_call.1
$region0: #{tpu_custom_call.1}
  #allocation0 [shape = 'u32[]', space=smem, size = 0x4, offset = 0x4, fixed_abs, tag = 'smem constant byte address 0x4 - core index']
  #allocation1 [shape = 'u32[144,128]{1,0:T(1,128)}', space=vmem, size = 0x12000, scoped, tag = 'internal scratch']
  %s0 = inlined_call_operand.vmem [shape: f32[8,32], index: 0, kind: input, shape index: {}]
  %s1 = inlined_call_operand.hbm [shape: f32[8,32], index: 1, kind: input, shape index: {}]
  %s2 = inlined_call_operand.vmem [shape: f32[8,32], index: 2, kind: input, shape index: {}]
  %s3 = inlined_call_operand.vmem [shape: f32[8,1], index: 3, kind: input, shape index: {}]
  %s4 = inlined_call_operand.hbm [shape: f32[8,128], index: 4, kind: output, shape index: {}]
  %s5 = sld [smem:[#allocation0]]
  $region30: #{tpu_custom_call.1} parent=0
    _
  %s7 = ssub.s32 1, %s5
  %s8 = scalar_select 0, %s7, %s5
  $region1: #{tpu_custom_call.1} parent=0
    #allocation2 [shape = 'u8[4096]{0}', space=vmem, size = 0x1000, scoped, tag = 'input window, operand 1, single buffered']
    #allocation3 [shape = 's32[1]{0}', space=sflag, size = 0x4, scoped, tag = 'scoped memory for tpu_custom_call.1']
    #allocation4 [shape = 's32[1]{0}', space=sflag, size = 0x4, scoped, tag = 'scoped memory for tpu_custom_call.1']
    #allocation5 [shape = 'u8[4096]{0}', space=vmem, size = 0x1000, scoped, tag = 'output window, operand 0, single buffered']
    %9 = vsyncpa [#allocation3], 0
    %10 = vsyncpa [#allocation4], 0
    // Predicated region
    $region2: #{tpu_custom_call.1} parent=1 // pred_check
      _
    $region3: #{tpu_custom_call.1} parent=1 // pred_check_branch
      %12 = sbr.rel (0) target = $region5
    $region4: #{tpu_custom_call.1} parent=1 // pred_region
      _
    $region5: #{tpu_custom_call.1} parent=1 // pred_fallthru
      _
    // Predicated region
    $region6: #{tpu_custom_call.1} parent=1 // pred_check
      _
    $region7: #{tpu_custom_call.1} parent=1 // pred_check_branch
      %14 = sbr.rel (0) target = $region9
    $region8: #{tpu_custom_call.1} parent=1 // pred_region
      %s16 = ssub.s32 128, 128
      %17 = vsyncadd [#allocation3], %s16
      %s19 = sshll.u32 [#allocation2], 4
      %s20 = int_to_ptr.vmem [resolvable:$true] %s19
      %22 = dma.hbm_to_vmem [thread:$0]  %s1, 128, %s20, [#allocation3]
    $region9: #{tpu_custom_call.1} parent=1 // pred_fallthru
      _
    // Predicated region
    $region10: #{tpu_custom_call.1} parent=1 // pred_check
      _
    $region11: #{tpu_custom_call.1} parent=1 // pred_check_branch
      %24 = sbr.rel (0) target = $region13
    $region12: #{tpu_custom_call.1} parent=1 // pred_region
      _
    $region13: #{tpu_custom_call.1} parent=1 // pred_fallthru
      _
    // Predicated region
    $region14: #{tpu_custom_call.1} parent=1 // pred_check
      _
    $region15: #{tpu_custom_call.1} parent=1 // pred_check_branch
      %26 = sbr.rel (0) target = $region17
    $region16: #{tpu_custom_call.1} parent=1 // pred_region
      _
    $region17: #{tpu_custom_call.1} parent=1 // pred_fallthru
      _
    // Predicated region
    $region18: #{tpu_custom_call.1} parent=1 // pred_check
      _
    $region19: #{tpu_custom_call.1} parent=1 // pred_check_branch
      %28 = sbr.rel (0) target = $region21
    $region20: #{tpu_custom_call.1} parent=1 // pred_region
      %29 = dma.done [#allocation3], 128
    $region21: #{tpu_custom_call.1} parent=1 // pred_fallthru
      _
    %v30 = vld [vmem:[%s0] sm:$0xff]
    %v31 = vld [vmem:[#allocation2] sm:$0xff]
    %v32 = vld [vmem:[%s2] sm:$0xff]
    %v33 = vld [vmem:[%s3] sm:$0xff]
    %v34 = vsub.f32 %v30, %v31
    %v35 = vsub.f32 %v30, %v32
    %v36 = vmul.f32 %v34, %v34
    %vm37 = vcmask 261120
    %v38 = vsel %vm37, %v36, 0.0
    %39 = vadd.xlane.f32.xlu0 %v38
    %v40 = vpop.xlane.xlu0 %39
    %v41 = vrsqrt.pop %v40
    %v42 = vmul.f32 %v40, %v41
    %vm43 = vcmp.eq.f32.partialorder %v40, inf
    %v44 = vsel %vm43, %v40, %v42
    %vm45 = vcmp.eq.f32.partialorder %v40, 0.0
    %v46 = vand.u32 %v40, 2147483648
    %v47 = vsel %vm45, %v46, %v44
    %v48 = vmul.f32 %v35, %v35
    %v49 = vsel %vm37, %v48, 0.0
    %50 = vadd.xlane.f32.xlu0 %v49
    %v51 = vpop.xlane.xlu0 %50
    %v52 = vrsqrt.pop %v51
    %v53 = vmul.f32 %v51, %v52
    %vm54 = vcmp.eq.f32.partialorder %v51, inf
    %v55 = vsel %vm54, %v51, %v53
    %vm56 = vcmp.eq.f32.partialorder %v51, 0.0
    %v57 = vand.u32 %v51, 2147483648
    %v58 = vsel %vm56, %v57, %v55
    %v59 = vsub.f32 1.0, %v58
    %v60 = vmul.f32 %v59, %v33
    %v61 = vadd.f32 %v47, %v60
    %v62 = vmax.f32 %v61, 0.0
    %s63 = smul.u32 0, 8
    %v64 = vlaneseq
    %v65 = vshrl.u32 %v64, 7
    %v66 = vstv %s63
    %v67 = vadd.s32 %v66, %v65
    %vm68 = vcmp.lt.s32.totalorder %v67, 8
    %v69 = vsel %vm68, %v62, 0.0
    %vm70 = vcmask 7168
    %v71 = vsel %vm70, %v69, 0.0
    %72 = vadd.xlane.f32.xlu0 %v71
    %v73 = vpop.xlane.xlu0 %72
    %v74 = vrot.slane %v73, 4
    %v75 = vadd.f32 %v73, %v74
    %v76 = vrot.slane %v75, 2
    %v77 = vadd.f32 %v75, %v76
    %v78 = vrot.slane %v77, 1
    %v79 = vadd.f32 %v77, %v78
    %s80 = vtos %v79
    %v81 = vlaneseq
    %v82 = vand.u32 %v81, 127
    %vm83 = vcmp.eq.s32.totalorder %v65, 0
    %vm84 = vcmp.eq.s32.totalorder %v82, 0
    %vm85 = vmand %vm83, %vm84
    %v86 = vstv %s80
    %v87 = vsel %vm85, %v86, 0.0
    %88 = vst [vmem:[#allocation5] sm:$0xff] %v87
    // Predicated region
    $region22: #{tpu_custom_call.1} parent=1 // pred_check
      _
    $region23: #{tpu_custom_call.1} parent=1 // pred_check_branch
      %90 = sbr.rel (0) target = $region25
    $region24: #{tpu_custom_call.1} parent=1 // pred_region
      %s92 = ssub.s32 128, 128
      %93 = vsyncadd [#allocation4], %s92
      %s95 = sshll.u32 [#allocation5], 4
      %s96 = int_to_ptr.vmem [resolvable:$true] %s95
      %98 = dma.vmem_to_hbm [thread:$0]  %s96, 128, %s4, [#allocation4]
    $region25: #{tpu_custom_call.1} parent=1 // pred_fallthru
      _
    // Predicated region
    $region26: #{tpu_custom_call.1} parent=1 // pred_check
      _
    $region27: #{tpu_custom_call.1} parent=1 // pred_check_branch
      %100 = sbr.rel (0) target = $region29
    $region28: #{tpu_custom_call.1} parent=1 // pred_region
      %101 = dma.done [#allocation4], 128
    $region29: #{tpu_custom_call.1} parent=1 // pred_fallthru
      _
    %102 = vsyncpa [#allocation3], 1
    %103 = vsyncpa [#allocation4], 1

</llo_original>
